<compile_context>
chip_gen: v6e
topology: v6e:2x2x1
jax: 0.10.0
libtpu: 0.0.40
codegen_flags: <defaults>
</compile_context>

<pallas_src>
import functools
import numpy as np
import jax
import jax.numpy as jnp
from jax.experimental import pallas as pl
from jax.experimental.pallas import tpu as pltpu

_LANES = 128  # lane width; hidden dims and the packed output are padded to this


def _round_up(x, m):
    return ((int(x) + m - 1) // m) * m


# ------------------------- fused Pallas kernel -------------------------

def _disc_kernel(x_rgb_ref, x_mask_ref, w_first_ref, w_rest_ref, bias_ref, out_ref,
                 *, n_hidden, din_rgb_p, din_mask_p):
    """Both MLPs fully fused for one batch tile.

    x_rgb_ref : (bt, din_rgb_p)  bf16
    x_mask_ref: (bt, din_mask_p) bf16
    w_first_ref: (din_rgb_p + din_mask_p, 128) bf16   rows [0,din_rgb_p) = rgb layer0,
                                                      rows [din_rgb_p,..) = mask layer0
    w_rest_ref : (2L, 128, 128) bf16   [0..L-2] rgb hidden, [L-1] rgb head (col 0),
                                       [L..2L-2] mask hidden, [2L-1] mask head (col 1)
    bias_ref   : (rows, 128) f32       rows 0..L-1 rgb, L..2L-1 mask, 2L = head biases
    out_ref    : (bt, 128) f32         lane 0 = sigmoid rgb, lane 1 = sigmoid mask
    """
    def mlp_logits(x, row0, row1, hidden_start, bias_start, head_idx):
        # First Linear (Din -> 128 padded lanes) on the MXU, f32 accumulate.
        w0 = w_first_ref[row0:row1, :]
        h = jnp.dot(x, w0, preferred_element_type=jnp.float32)
        h = jnp.maximum(h + bias_ref[bias_start:bias_start + 1, :], 0.0)
        # Remaining hidden Linears: lane-dense 128x128 tiles.
        for j in range(1, n_hidden):
            w = w_rest_ref[hidden_start + j - 1]
            h = jnp.dot(h.astype(jnp.bfloat16), w, preferred_element_type=jnp.float32)
            h = jnp.maximum(h + bias_ref[bias_start + j:bias_start + j + 1, :], 0.0)
        # Head Linear(H, 1) folded into a 128x128 matmul whose only nonzero column is
        # this head's output lane -> no XLU cross-lane reduction, stays lane-dense.
        w_head = w_rest_ref[head_idx]
        return jnp.dot(h.astype(jnp.bfloat16), w_head, preferred_element_type=jnp.float32)

    logits = mlp_logits(x_rgb_ref[...], 0, din_rgb_p,
                        hidden_start=0, bias_start=0, head_idx=n_hidden - 1)
    logits = logits + mlp_logits(x_mask_ref[...], din_rgb_p, din_rgb_p + din_mask_p,
                                 hidden_start=n_hidden, bias_start=n_hidden,
                                 head_idx=2 * n_hidden - 1)
    # Combined head-bias row: lane 0 = rgb head bias, lane 1 = mask head bias.
    logits = logits + bias_ref[2 * n_hidden:2 * n_hidden + 1, :]
    out_ref[...] = jax.nn.sigmoid(logits).astype(out_ref.dtype)  # EUP sigmoid


# ------------------------- parameter setup (deterministic, packed) -------------------------

def init_packed_params(key, rgb_input_dim, mask_input_dim, hidden_dims):
    """PyTorch-Linear-style init (U(-1/sqrt(fan_in), +1/sqrt(fan_in))) packed into the
    three buffers the kernel expects: bf16 weights, lane/sublane padded, f32 biases."""
    L = len(hidden_dims)
    assert L >= 1
    # TODO(synk): hidden dims > 128 need multi-tile lane packing; not needed here.
    assert all(h <= _LANES for h in hidden_dims)

    din_rgb_p = _round_up(rgb_input_dim, _LANES)
    din_mask_p = _round_up(mask_input_dim, _LANES)

    def linear(k, fan_in, fan_out):
        kw, kb = jax.random.split(k)
        bound = 1.0 / float(np.sqrt(fan_in))
        w = jax.random.uniform(kw, (fan_in, fan_out), minval=-bound, maxval=bound,
                               dtype=jnp.float32)
        b = jax.random.uniform(kb, (fan_out,), minval=-bound, maxval=bound,
                               dtype=jnp.float32)
        return w, b

    def mlp_layers(k, in_dim):
        dims = [int(in_dim)] + list(hidden_dims) + [1]
        ks = jax.random.split(k, len(dims) - 1)
        return [linear(ks[i], dims[i], dims[i + 1]) for i in range(len(dims) - 1)]

    k_rgb, k_mask = jax.random.split(key)
    rgb_layers = mlp_layers(k_rgb, rgb_input_dim)    # (w:(Din,Dout), b:(Dout,)) per layer
    mask_layers = mlp_layers(k_mask, mask_input_dim)

    # ---- pack first-layer weights (concatenated along rows, bf16) ----
    w_first = jnp.zeros((din_rgb_p + din_mask_p, _LANES), jnp.float32)
    w_first = w_first.at[:rgb_input_dim, :hidden_dims[0]].set(rgb_layers[0][0])
    w_first = w_first.at[din_rgb_p:din_rgb_p + mask_input_dim, :hidden_dims[0]].set(
        mask_layers[0][0])
    w_first = w_first.astype(jnp.bfloat16)

    # ---- pack remaining weights: hidden 128x128 tiles + heads in lanes 0 / 1 ----
    w_rest = jnp.zeros((2 * L, _LANES, _LANES), jnp.float32)
    for j in range(1, L):
        w_rest = w_rest.at[j - 1, :hidden_dims[j - 1], :hidden_dims[j]].set(rgb_layers[j][0])
        w_rest = w_rest.at[L + j - 1, :hidden_dims[j - 1], :hidden_dims[j]].set(mask_layers[j][0])
    w_rest = w_rest.at[L - 1, :hidden_dims[-1], 0].set(rgb_layers[L][0][:, 0])      # rgb head
    w_rest = w_rest.at[2 * L - 1, :hidden_dims[-1], 1].set(mask_layers[L][0][:, 0])  # mask head
    w_rest = w_rest.astype(jnp.bfloat16)

    # ---- pack all biases into one f32 buffer ----
    n_bias_rows = _round_up(2 * L + 1, 8)
    biases = jnp.zeros((n_bias_rows, _LANES), jnp.float32)
    for j in range(L):
        biases = biases.at[j, :hidden_dims[j]].set(rgb_layers[j][1])
        biases = biases.at[L + j, :hidden_dims[j]].set(mask_layers[j][1])
    biases = biases.at[2 * L, 0].set(rgb_layers[L][1][0])
    biases = biases.at[2 * L, 1].set(mask_layers[L][1][0])

    return dict(w_first=w_first, w_rest=w_rest, biases=biases,
                din_rgb_p=din_rgb_p, din_mask_p=din_mask_p, n_hidden=L,
                rgb_layers=rgb_layers, mask_layers=mask_layers)


# ------------------------- discriminator forward -------------------------

def discriminator_forward(rgb, mask, packed):
    """rgb: (B, C, H, W), mask: (B, H, W).  Returns ((B,1), (B,1)) sigmoid outputs."""
    B = int(rgb.shape[0])
    rgb_flat = rgb.reshape(B, -1).astype(jnp.float32)
    mask_flat = mask.reshape(B, -1).astype(jnp.float32)

    din_rgb_p = packed["din_rgb_p"]
    din_mask_p = packed["din_mask_p"]
    n_hidden = packed["n_hidden"]
    w_first, w_rest, biases = packed["w_first"], packed["w_rest"], packed["biases"]

    # Batch tiling: sublane-pad tiny batches to 8 rows; tile larger batches at 128 so the
    # parallel grid axis can be sharded across TensorCores (v7x) and pipelined.
    if B <= _LANES:
        bt = _round_up(B, 8)
        b_pad = bt
    else:
        bt = _LANES
        b_pad = _round_up(B, _LANES)
    nb = b_pad // bt

    def pad2(x, rows, cols):
        return jnp.pad(x, ((0, rows - x.shape[0]), (0, cols - x.shape[1])))

    # Zero-pad batch (sublanes) and Din (lanes); cast to bf16 for the MXU.
    x_rgb = pad2(rgb_flat, b_pad, din_rgb_p).astype(jnp.bfloat16)
    x_mask = pad2(mask_flat, b_pad, din_mask_p).astype(jnp.bfloat16)

    kernel = functools.partial(_disc_kernel, n_hidden=n_hidden,
                               din_rgb_p=din_rgb_p, din_mask_p=din_mask_p)

    # Advisory cost estimate so XLA can overlap this tiny call with surrounding ops.
    flops = (2 * b_pad * (din_rgb_p + din_mask_p) * _LANES
             + 2 * b_pad * (2 * n_hidden) * _LANES * _LANES)
    bytes_accessed = (x_rgb.size * 2 + x_mask.size * 2 + w_first.size * 2
                      + w_rest.size * 2 + biases.size * 4 + b_pad * _LANES * 4)

    # TODO(synk): for real image sizes (e.g. 3*256*256 -> Din~196K, ~48 MB bf16 weight)
    # the first layer needs a K-tiled grid axis ("arbitrary", reduction last) with a
    # VMEM f32 accumulator and an explicit vmem_limit_bytes, especially on v7x/v5e.
    out = pl.pallas_call(
        kernel,
        out_shape=jax.ShapeDtypeStruct((b_pad, _LANES), jnp.float32),
        grid_spec=pltpu.PrefetchScalarGridSpec(
            num_scalar_prefetch=0,
            grid=(nb,),
            in_specs=[
                pl.BlockSpec((bt, din_rgb_p), lambda i: (i, 0)),
                pl.BlockSpec((bt, din_mask_p), lambda i: (i, 0)),
                # Weights/biases: block-constant index maps -> DMA'd once, stay resident.
                pl.BlockSpec(w_first.shape, lambda i: (0, 0)),
                pl.BlockSpec(w_rest.shape, lambda i: (0, 0, 0)),
                pl.BlockSpec(biases.shape, lambda i: (0, 0)),
            ],
            out_specs=pl.BlockSpec((bt, _LANES), lambda i: (i, 0)),
        ),
        compiler_params=pltpu.CompilerParams(dimension_semantics=("parallel",)),
        cost_estimate=pl.CostEstimate(flops=int(flops),
                                      transcendentals=int(b_pad * _LANES),
                                      bytes_accessed=int(bytes_accessed)),
    )(x_rgb, x_mask, w_first, w_rest, biases)

    validity_rgb = out[:B, 0:1]
    validity_mask = out[:B, 1:2]
    return validity_rgb, validity_mask


# ------------------------- pure-JAX reference (same bf16/f32 regime) -------------------------

def reference_forward(rgb, mask, packed):
    def mlp(x, layers):
        h = x.astype(jnp.float32)
        for w, b in layers[:-1]:
            h = jnp.dot(h.astype(jnp.bfloat16), w.astype(jnp.bfloat16),
                        preferred_element_type=jnp.float32) + b
            h = jnp.maximum(h, 0.0)
        w, b = layers[-1]
        logit = jnp.dot(h.astype(jnp.bfloat16), w.astype(jnp.bfloat16),
                        preferred_element_type=jnp.float32) + b
        return jax.nn.sigmoid(logit)

    B = rgb.shape[0]
    return (mlp(rgb.reshape(B, -1), packed["rgb_layers"]),
            mlp(mask.reshape(B, -1), packed["mask_layers"]))


# ------------------------- demo / smoke test -------------------------

if __name__ == "__main__":
    # Small shapes consistent with the module.
    img_shape = (4, 16, 16)          # (C, H, W)
    hidden_dims = [32, 32]
    batch = 2

    C, H, W = img_shape
    rgb_input_dim = int(np.prod(img_shape))        # C*H*W = 1024
    mask_input_dim = int(np.prod(img_shape[1:]))   # H*W   = 256

    key = jax.random.PRNGKey(0)
    k_params, k_rgb_x, k_mask_x = jax.random.split(key, 3)

    packed = init_packed_params(k_params, rgb_input_dim, mask_input_dim, hidden_dims)

    rgb = jax.random.normal(k_rgb_x, (batch, C, H, W), dtype=jnp.float32)
    mask = jax.random.uniform(k_mask_x, (batch, H, W), dtype=jnp.float32)

    fwd = jax.jit(lambda r, m: discriminator_forward(r, m, packed))
    validity_rgb, validity_mask = fwd(rgb, mask)
    jax.block_until_ready((validity_rgb, validity_mask))

    # Sanity: shapes (B, 1), finite, in [0, 1], and matches the plain-JAX reference.
    assert validity_rgb.shape == (batch, 1)
    assert validity_mask.shape == (batch, 1)
    assert bool(jnp.all(jnp.isfinite(validity_rgb))) and bool(jnp.all(jnp.isfinite(validity_mask)))
    assert bool(jnp.all((validity_rgb >= 0.0) & (validity_rgb <= 1.0)))
    assert bool(jnp.all((validity_mask >= 0.0) & (validity_mask <= 1.0)))

    ref_rgb, ref_mask = reference_forward(rgb, mask, packed)
    assert bool(jnp.allclose(validity_rgb, ref_rgb, atol=2e-2)), "rgb head mismatch vs reference"
    assert bool(jnp.allclose(validity_mask, ref_mask, atol=2e-2)), "mask head mismatch vs reference"

    print("KERNEL_OK")
</pallas_src>

<mosaic_0001>
module attributes {stable_mosaic.version = 11 : i64} {
  func.func @_disc_kernel(%arg0: i32, %arg1: memref<8x1024xbf16, #tpu.memory_space<vmem>>, %arg2: memref<8x256xbf16, #tpu.memory_space<vmem>>, %arg3: memref<1280x128xbf16, #tpu.memory_space<vmem>>, %arg4: memref<4x128x128xbf16, #tpu.memory_space<vmem>>, %arg5: memref<8x128xf32, #tpu.memory_space<vmem>>, %arg6: memref<8x128xf32, #tpu.memory_space<vmem>>) attributes {dimension_semantics = [#tpu.dimension_semantics<parallel>], iteration_bounds = array<i64: 1>, scalar_prefetch = 0 : i64, scratch_operands = 0 : i64, tpu.core_type = #tpu.core_type<tc>, window_params = [{transform_indices = @transform_0, window_bounds = array<i64: 8, 1024>}, {transform_indices = @transform_1, window_bounds = array<i64: 8, 256>}, {pipeline_mode = #tpu.pipeline_mode<synchronous>, transform_indices = @transform_2, window_bounds = array<i64: 1280, 128>}, {pipeline_mode = #tpu.pipeline_mode<synchronous>, transform_indices = @transform_3, window_bounds = array<i64: 4, 128, 128>}, {pipeline_mode = #tpu.pipeline_mode<synchronous>, transform_indices = @transform_4, window_bounds = array<i64: 8, 128>}, {transform_indices = @transform_5, window_bounds = array<i64: 8, 128>}]} {
    %c0 = arith.constant 0 : index
    %c0_0 = arith.constant 0 : index
    %0 = vector.load %arg1[%c0, %c0_0] : memref<8x1024xbf16, #tpu.memory_space<vmem>>, vector<8x1024xbf16>
    %c0_1 = arith.constant 0 : index
    %c0_2 = arith.constant 0 : index
    %1 = vector.load %arg3[%c0_1, %c0_2] : memref<1280x128xbf16, #tpu.memory_space<vmem>>, vector<1024x128xbf16>
    %cst = arith.constant dense<0.000000e+00> : vector<8x128xf32>
    %2 = tpu.matmul %0, %1, %cst {dimension_numbers = #tpu.dot_dimension_numbers<[1], [0], [0], [1], [0, 0, 1, 1], [], []>} : vector<8x1024xbf16>, vector<1024x128xbf16>, vector<8x128xf32> -> vector<8x128xf32>
    %c0_3 = arith.constant 0 : index
    %c0_4 = arith.constant 0 : index
    %3 = vector.load %arg5[%c0_3, %c0_4] : memref<8x128xf32, #tpu.memory_space<vmem>>, vector<1x128xf32>
    %4 = vector.broadcast %3 : vector<1x128xf32> to vector<8x128xf32>
    %5 = arith.addf %2, %4 : vector<8x128xf32>
    %cst_5 = arith.constant 0.000000e+00 : f32
    %6 = vector.broadcast %cst_5 : f32 to vector<8x128xf32>
    %7 = arith.maximumf %5, %6 : vector<8x128xf32>
    %c0_6 = arith.constant 0 : index
    %c0_7 = arith.constant 0 : index
    %c0_8 = arith.constant 0 : index
    %8 = vector.load %arg4[%c0_6, %c0_7, %c0_8] : memref<4x128x128xbf16, #tpu.memory_space<vmem>>, vector<1x128x128xbf16>
    %9 = vector.shape_cast %8 : vector<1x128x128xbf16> to vector<128x128xbf16>
    %10 = arith.truncf %7 : vector<8x128xf32> to vector<8x128xbf16>
    %cst_9 = arith.constant dense<0.000000e+00> : vector<8x128xf32>
    %11 = tpu.matmul %10, %9, %cst_9 {dimension_numbers = #tpu.dot_dimension_numbers<[1], [0], [0], [1], [0, 0, 1, 1], [], []>} : vector<8x128xbf16>, vector<128x128xbf16>, vector<8x128xf32> -> vector<8x128xf32>
    %c1 = arith.constant 1 : index
    %c0_10 = arith.constant 0 : index
    %12 = vector.load %arg5[%c1, %c0_10] : memref<8x128xf32, #tpu.memory_space<vmem>>, vector<1x128xf32>
    %13 = vector.broadcast %12 : vector<1x128xf32> to vector<8x128xf32>
    %14 = arith.addf %11, %13 : vector<8x128xf32>
    %cst_11 = arith.constant 0.000000e+00 : f32
    %15 = vector.broadcast %cst_11 : f32 to vector<8x128xf32>
    %16 = arith.maximumf %14, %15 : vector<8x128xf32>
    %c1_12 = arith.constant 1 : index
    %c0_13 = arith.constant 0 : index
    %c0_14 = arith.constant 0 : index
    %17 = vector.load %arg4[%c1_12, %c0_13, %c0_14] : memref<4x128x128xbf16, #tpu.memory_space<vmem>>, vector<1x128x128xbf16>
    %18 = vector.shape_cast %17 : vector<1x128x128xbf16> to vector<128x128xbf16>
    %19 = arith.truncf %16 : vector<8x128xf32> to vector<8x128xbf16>
    %cst_15 = arith.constant dense<0.000000e+00> : vector<8x128xf32>
    %20 = tpu.matmul %19, %18, %cst_15 {dimension_numbers = #tpu.dot_dimension_numbers<[1], [0], [0], [1], [0, 0, 1, 1], [], []>} : vector<8x128xbf16>, vector<128x128xbf16>, vector<8x128xf32> -> vector<8x128xf32>
    %c0_16 = arith.constant 0 : index
    %c0_17 = arith.constant 0 : index
    %21 = vector.load %arg2[%c0_16, %c0_17] : memref<8x256xbf16, #tpu.memory_space<vmem>>, vector<8x256xbf16>
    %c1024 = arith.constant 1024 : index
    %c0_18 = arith.constant 0 : index
    %22 = vector.load %arg3[%c1024, %c0_18] : memref<1280x128xbf16, #tpu.memory_space<vmem>>, vector<256x128xbf16>
    %cst_19 = arith.constant dense<0.000000e+00> : vector<8x128xf32>
    %23 = tpu.matmul %21, %22, %cst_19 {dimension_numbers = #tpu.dot_dimension_numbers<[1], [0], [0], [1], [0, 0, 1, 1], [], []>} : vector<8x256xbf16>, vector<256x128xbf16>, vector<8x128xf32> -> vector<8x128xf32>
    %c2 = arith.constant 2 : index
    %c0_20 = arith.constant 0 : index
    %24 = vector.load %arg5[%c2, %c0_20] : memref<8x128xf32, #tpu.memory_space<vmem>>, vector<1x128xf32>
    %25 = vector.broadcast %24 : vector<1x128xf32> to vector<8x128xf32>
    %26 = arith.addf %23, %25 : vector<8x128xf32>
    %cst_21 = arith.constant 0.000000e+00 : f32
    %27 = vector.broadcast %cst_21 : f32 to vector<8x128xf32>
    %28 = arith.maximumf %26, %27 : vector<8x128xf32>
    %c2_22 = arith.constant 2 : index
    %c0_23 = arith.constant 0 : index
    %c0_24 = arith.constant 0 : index
    %29 = vector.load %arg4[%c2_22, %c0_23, %c0_24] : memref<4x128x128xbf16, #tpu.memory_space<vmem>>, vector<1x128x128xbf16>
    %30 = vector.shape_cast %29 : vector<1x128x128xbf16> to vector<128x128xbf16>
    %31 = arith.truncf %28 : vector<8x128xf32> to vector<8x128xbf16>
    %cst_25 = arith.constant dense<0.000000e+00> : vector<8x128xf32>
    %32 = tpu.matmul %31, %30, %cst_25 {dimension_numbers = #tpu.dot_dimension_numbers<[1], [0], [0], [1], [0, 0, 1, 1], [], []>} : vector<8x128xbf16>, vector<128x128xbf16>, vector<8x128xf32> -> vector<8x128xf32>
    %c3 = arith.constant 3 : index
    %c0_26 = arith.constant 0 : index
    %33 = vector.load %arg5[%c3, %c0_26] : memref<8x128xf32, #tpu.memory_space<vmem>>, vector<1x128xf32>
    %34 = vector.broadcast %33 : vector<1x128xf32> to vector<8x128xf32>
    %35 = arith.addf %32, %34 : vector<8x128xf32>
    %cst_27 = arith.constant 0.000000e+00 : f32
    %36 = vector.broadcast %cst_27 : f32 to vector<8x128xf32>
    %37 = arith.maximumf %35, %36 : vector<8x128xf32>
    %c3_28 = arith.constant 3 : index
    %c0_29 = arith.constant 0 : index
    %c0_30 = arith.constant 0 : index
    %38 = vector.load %arg4[%c3_28, %c0_29, %c0_30] : memref<4x128x128xbf16, #tpu.memory_space<vmem>>, vector<1x128x128xbf16>
    %39 = vector.shape_cast %38 : vector<1x128x128xbf16> to vector<128x128xbf16>
    %40 = arith.truncf %37 : vector<8x128xf32> to vector<8x128xbf16>
    %cst_31 = arith.constant dense<0.000000e+00> : vector<8x128xf32>
    %41 = tpu.matmul %40, %39, %cst_31 {dimension_numbers = #tpu.dot_dimension_numbers<[1], [0], [0], [1], [0, 0, 1, 1], [], []>} : vector<8x128xbf16>, vector<128x128xbf16>, vector<8x128xf32> -> vector<8x128xf32>
    %42 = arith.addf %20, %41 : vector<8x128xf32>
    %c4 = arith.constant 4 : index
    %c0_32 = arith.constant 0 : index
    %43 = vector.load %arg5[%c4, %c0_32] : memref<8x128xf32, #tpu.memory_space<vmem>>, vector<1x128xf32>
    %44 = vector.broadcast %43 : vector<1x128xf32> to vector<8x128xf32>
    %45 = arith.addf %42, %44 : vector<8x128xf32>
    %46 = arith.negf %45 : vector<8x128xf32>
    %47 = math.exp %46 : vector<8x128xf32>
    %cst_33 = arith.constant 1.000000e+00 : f32
    %48 = vector.broadcast %cst_33 : f32 to vector<8x128xf32>
    %49 = arith.addf %48, %47 : vector<8x128xf32>
    %50 = arith.divf %48, %49 : vector<8x128xf32>
    %c0_34 = arith.constant 0 : index
    %c0_35 = arith.constant 0 : index
    %51 = vector.load %arg6[%c0_34, %c0_35] : memref<8x128xf32, #tpu.memory_space<vmem>>, vector<8x128xf32>
    tpu.vector_store %arg6[%c0_34, %c0_35], %50 {strides = array<i32>} : memref<8x128xf32, #tpu.memory_space<vmem>>, vector<8x128xf32>,
    return
  }
  func.func @transform_0(%arg0: i32) -> (i32, i32) {
    %c0_i32 = arith.constant 0 : i32
    %c0_i32_0 = arith.constant 0 : i32
    return %arg0, %c0_i32 : i32, i32
  }
  func.func @transform_1(%arg0: i32) -> (i32, i32) {
    %c0_i32 = arith.constant 0 : i32
    %c0_i32_0 = arith.constant 0 : i32
    return %arg0, %c0_i32 : i32, i32
  }
  func.func @transform_2(%arg0: i32) -> (i32, i32) {
    %c0_i32 = arith.constant 0 : i32
    %c0_i32_0 = arith.constant 0 : i32
    %c0_i32_1 = arith.constant 0 : i32
    return %c0_i32, %c0_i32_0 : i32, i32
  }
  func.func @transform_3(%arg0: i32) -> (i32, i32, i32) {
    %c0_i32 = arith.constant 0 : i32
    %c0_i32_0 = arith.constant 0 : i32
    %c0_i32_1 = arith.constant 0 : i32
    %c0_i32_2 = arith.constant 0 : i32
    return %c0_i32, %c0_i32_0, %c0_i32_1 : i32, i32, i32
  }
  func.func @transform_4(%arg0: i32) -> (i32, i32) {
    %c0_i32 = arith.constant 0 : i32
    %c0_i32_0 = arith.constant 0 : i32
    %c0_i32_1 = arith.constant 0 : i32
    return %c0_i32, %c0_i32_0 : i32, i32
  }
  func.func @transform_5(%arg0: i32) -> (i32, i32) {
    %c0_i32 = arith.constant 0 : i32
    %c0_i32_0 = arith.constant 0 : i32
    return %arg0, %c0_i32 : i32, i32
  }
}

</mosaic_0001>

<llo_original>
// kernel: _lambda_.1
$region0: #{_lambda_.1}
  #allocation0 [shape = 'u32[]', space=smem, size = 0x4, offset = 0x4, fixed_abs, tag = 'smem constant byte address 0x4 - core index']
  #allocation1 [shape = 'u32[144,128]{1,0:T(1,128)}', space=vmem, size = 0x12000, scoped, tag = 'internal scratch']
  %s0 = inlined_call_operand.vmem [shape: bf16[8,1024], index: 0, kind: input, shape index: {}]
  %s1 = inlined_call_operand.vmem [shape: bf16[8,256], index: 1, kind: input, shape index: {}]
  %s2 = inlined_call_operand.hbm [shape: bf16[1280,128], index: 2, kind: input, shape index: {}]
  %s3 = inlined_call_operand.vmem [shape: bf16[4,128,128], index: 3, kind: input, shape index: {}]
  %s4 = inlined_call_operand.vmem [shape: f32[8,128], index: 4, kind: input, shape index: {}]
  %s5 = inlined_call_operand.vmem [shape: f32[8,128], index: 5, kind: output, shape index: {}]
  %s6 = sld [smem:[#allocation0]]
  $region34: #{_lambda_.1} parent=0
    _
  %s8 = ssub.s32 1, %s6
  %s9 = scalar_select 0, %s8, %s6
  $region1: #{_lambda_.1} parent=0
    #allocation2 [shape = 'u8[327680]{0}', space=vmem, size = 0x50000, scoped, tag = 'input window, operand 2, single buffered']
    #allocation3 [shape = 's32[1]{0}', space=sflag, size = 0x4, scoped, tag = 'scoped memory for _lambda_.1']
    %10 = vsyncpa [#allocation3], 0
    // Predicated region
    $region2: #{_lambda_.1} parent=1 // pred_check
      _
    $region3: #{_lambda_.1} parent=1 // pred_check_branch
      %12 = sbr.rel (0) target = $region5
    $region4: #{_lambda_.1} parent=1 // pred_region
      _
    $region5: #{_lambda_.1} parent=1 // pred_fallthru
      _
    // Predicated region
    $region6: #{_lambda_.1} parent=1 // pred_check
      _
    $region7: #{_lambda_.1} parent=1 // pred_check_branch
      %14 = sbr.rel (0) target = $region9
    $region8: #{_lambda_.1} parent=1 // pred_region
      _
    $region9: #{_lambda_.1} parent=1 // pred_fallthru
      _
    // Predicated region
    $region10: #{_lambda_.1} parent=1 // pred_check
      _
    $region11: #{_lambda_.1} parent=1 // pred_check_branch
      %16 = sbr.rel (0) target = $region13
    $region12: #{_lambda_.1} parent=1 // pred_region
      %s18 = ssub.s32 10240, 10240
      %19 = vsyncadd [#allocation3], %s18
      %s20 = sshll.u32 [#allocation2], 4
      %s21 = int_to_ptr.vmem [resolvable:$true] %s20
      %26 = dma.hbm_to_vmem [thread:$0]  %s2, 10240, %s21, [#allocation3], 64, 64, 4
    $region13: #{_lambda_.1} parent=1 // pred_fallthru
      _
    // Predicated region
    $region14: #{_lambda_.1} parent=1 // pred_check
      _
    $region15: #{_lambda_.1} parent=1 // pred_check_branch
      %28 = sbr.rel (0) target = $region17
    $region16: #{_lambda_.1} parent=1 // pred_region
      _
    $region17: #{_lambda_.1} parent=1 // pred_fallthru
      _
    // Predicated region
    $region18: #{_lambda_.1} parent=1 // pred_check
      _
    $region19: #{_lambda_.1} parent=1 // pred_check_branch
      %30 = sbr.rel (0) target = $region21
    $region20: #{_lambda_.1} parent=1 // pred_region
      _
    $region21: #{_lambda_.1} parent=1 // pred_fallthru
      _
    // Predicated region
    $region22: #{_lambda_.1} parent=1 // pred_check
      _
    $region23: #{_lambda_.1} parent=1 // pred_check_branch
      %32 = sbr.rel (0) target = $region25
    $region24: #{_lambda_.1} parent=1 // pred_region
      %33 = dma.done [#allocation3], 10240
    $region25: #{_lambda_.1} parent=1 // pred_fallthru
      _
    %v35 = vld [vmem:[%s0] sm:$0xff]
    %v36 = vld [vmem:[%s0 + $0x8] sm:$0xff]
    %v37 = vld [vmem:[%s0 + $0x10] sm:$0xff]
    %v38 = vld [vmem:[%s0 + $0x18] sm:$0xff]
    %v39 = vld [vmem:[#allocation2] sm:$0xf]
    %v40 = vld [vmem:[#allocation2 + $0x4] sm:$0xf]
    %v41 = vld [vmem:[#allocation2 + $0x8] sm:$0xf]
    %v42 = vld [vmem:[#allocation2 + $0xc] sm:$0xf]
    %v43 = vld [vmem:[#allocation2 + $0x10] sm:$0xf]
    %v44 = vld [vmem:[#allocation2 + $0x14] sm:$0xf]
    %v45 = vld [vmem:[#allocation2 + $0x18] sm:$0xf]
    %v46 = vld [vmem:[#allocation2 + $0x1c] sm:$0xf]
    %v47 = vld [vmem:[#allocation2 + $0x20] sm:$0xf]
    %v48 = vld [vmem:[#allocation2 + $0x24] sm:$0xf]
    %v49 = vld [vmem:[#allocation2 + $0x28] sm:$0xf]
    %v50 = vld [vmem:[#allocation2 + $0x2c] sm:$0xf]
    %v51 = vld [vmem:[#allocation2 + $0x30] sm:$0xf]
    %v52 = vld [vmem:[#allocation2 + $0x34] sm:$0xf]
    %v53 = vld [vmem:[#allocation2 + $0x38] sm:$0xf]
    %v54 = vld [vmem:[#allocation2 + $0x3c] sm:$0xf]
    %v55 = vld [vmem:[#allocation2 + $0x40] sm:$0xf]
    %v56 = vld [vmem:[#allocation2 + $0x44] sm:$0xf]
    %v57 = vld [vmem:[#allocation2 + $0x48] sm:$0xf]
    %v58 = vld [vmem:[#allocation2 + $0x4c] sm:$0xf]
    %v59 = vld [vmem:[#allocation2 + $0x50] sm:$0xf]
    %v60 = vld [vmem:[#allocation2 + $0x54] sm:$0xf]
    %v61 = vld [vmem:[#allocation2 + $0x58] sm:$0xf]
    %v62 = vld [vmem:[#allocation2 + $0x5c] sm:$0xf]
    %v63 = vld [vmem:[#allocation2 + $0x60] sm:$0xf]
    %v64 = vld [vmem:[#allocation2 + $0x64] sm:$0xf]
    %v65 = vld [vmem:[#allocation2 + $0x68] sm:$0xf]
    %v66 = vld [vmem:[#allocation2 + $0x6c] sm:$0xf]
    %v67 = vld [vmem:[#allocation2 + $0x70] sm:$0xf]
    %v68 = vld [vmem:[#allocation2 + $0x74] sm:$0xf]
    %v69 = vld [vmem:[#allocation2 + $0x78] sm:$0xf]
    %v70 = vld [vmem:[#allocation2 + $0x7c] sm:$0xf]
    %v71 = vld [vmem:[#allocation2 + $0x80] sm:$0xf]
    %v72 = vld [vmem:[#allocation2 + $0x84] sm:$0xf]
    %v73 = vld [vmem:[#allocation2 + $0x88] sm:$0xf]
    %v74 = vld [vmem:[#allocation2 + $0x8c] sm:$0xf]
    %v75 = vld [vmem:[#allocation2 + $0x90] sm:$0xf]
    %v76 = vld [vmem:[#allocation2 + $0x94] sm:$0xf]
    %v77 = vld [vmem:[#allocation2 + $0x98] sm:$0xf]
    %v78 = vld [vmem:[#allocation2 + $0x9c] sm:$0xf]
    %v79 = vld [vmem:[#allocation2 + $0xa0] sm:$0xf]
    %v80 = vld [vmem:[#allocation2 + $0xa4] sm:$0xf]
    %v81 = vld [vmem:[#allocation2 + $0xa8] sm:$0xf]
    %v82 = vld [vmem:[#allocation2 + $0xac] sm:$0xf]
    %v83 = vld [vmem:[#allocation2 + $0xb0] sm:$0xf]
    %v84 = vld [vmem:[#allocation2 + $0xb4] sm:$0xf]
    %v85 = vld [vmem:[#allocation2 + $0xb8] sm:$0xf]
    %v86 = vld [vmem:[#allocation2 + $0xbc] sm:$0xf]
    %v87 = vld [vmem:[#allocation2 + $0xc0] sm:$0xf]
    %v88 = vld [vmem:[#allocation2 + $0xc4] sm:$0xf]
    %v89 = vld [vmem:[#allocation2 + $0xc8] sm:$0xf]
    %v90 = vld [vmem:[#allocation2 + $0xcc] sm:$0xf]
    %v91 = vld [vmem:[#allocation2 + $0xd0] sm:$0xf]
    %v92 = vld [vmem:[#allocation2 + $0xd4] sm:$0xf]
    %v93 = vld [vmem:[#allocation2 + $0xd8] sm:$0xf]
    %v94 = vld [vmem:[#allocation2 + $0xdc] sm:$0xf]
    %v95 = vld [vmem:[#allocation2 + $0xe0] sm:$0xf]
    %v96 = vld [vmem:[#allocation2 + $0xe4] sm:$0xf]
    %v97 = vld [vmem:[#allocation2 + $0xe8] sm:$0xf]
    %v98 = vld [vmem:[#allocation2 + $0xec] sm:$0xf]
    %v99 = vld [vmem:[#allocation2 + $0xf0] sm:$0xf]
    %v100 = vld [vmem:[#allocation2 + $0xf4] sm:$0xf]
    %v101 = vld [vmem:[#allocation2 + $0xf8] sm:$0xf]
    %v102 = vld [vmem:[#allocation2 + $0xfc] sm:$0xf]
    %v103 = vld [vmem:[#allocation2 + $0x100] sm:$0xf]
    %v104 = vld [vmem:[#allocation2 + $0x104] sm:$0xf]
    %v105 = vld [vmem:[#allocation2 + $0x108] sm:$0xf]
    %v106 = vld [vmem:[#allocation2 + $0x10c] sm:$0xf]
    %v107 = vld [vmem:[#allocation2 + $0x110] sm:$0xf]
    %v108 = vld [vmem:[#allocation2 + $0x114] sm:$0xf]
    %v109 = vld [vmem:[#allocation2 + $0x118] sm:$0xf]
    %v110 = vld [vmem:[#allocation2 + $0x11c] sm:$0xf]
    %v111 = vld [vmem:[#allocation2 + $0x120] sm:$0xf]
    %v112 = vld [vmem:[#allocation2 + $0x124] sm:$0xf]
    %v113 = vld [vmem:[#allocation2 + $0x128] sm:$0xf]
    %v114 = vld [vmem:[#allocation2 + $0x12c] sm:$0xf]
    %v115 = vld [vmem:[#allocation2 + $0x130] sm:$0xf]
    %v116 = vld [vmem:[#allocation2 + $0x134] sm:$0xf]
    %v117 = vld [vmem:[#allocation2 + $0x138] sm:$0xf]
    %v118 = vld [vmem:[#allocation2 + $0x13c] sm:$0xf]
    %v119 = vld [vmem:[#allocation2 + $0x140] sm:$0xf]
    %v120 = vld [vmem:[#allocation2 + $0x144] sm:$0xf]
    %v121 = vld [vmem:[#allocation2 + $0x148] sm:$0xf]
    %v122 = vld [vmem:[#allocation2 + $0x14c] sm:$0xf]
    %v123 = vld [vmem:[#allocation2 + $0x150] sm:$0xf]
    %v124 = vld [vmem:[#allocation2 + $0x154] sm:$0xf]
    %v125 = vld [vmem:[#allocation2 + $0x158] sm:$0xf]
    %v126 = vld [vmem:[#allocation2 + $0x15c] sm:$0xf]
    %v127 = vld [vmem:[#allocation2 + $0x160] sm:$0xf]
    %v128 = vld [vmem:[#allocation2 + $0x164] sm:$0xf]
    %v129 = vld [vmem:[#allocation2 + $0x168] sm:$0xf]
    %v130 = vld [vmem:[#allocation2 + $0x16c] sm:$0xf]
    %v131 = vld [vmem:[#allocation2 + $0x170] sm:$0xf]
    %v132 = vld [vmem:[#allocation2 + $0x174] sm:$0xf]
    %v133 = vld [vmem:[#allocation2 + $0x178] sm:$0xf]
    %v134 = vld [vmem:[#allocation2 + $0x17c] sm:$0xf]
    %v135 = vld [vmem:[#allocation2 + $0x180] sm:$0xf]
    %v136 = vld [vmem:[#allocation2 + $0x184] sm:$0xf]
    %v137 = vld [vmem:[#allocation2 + $0x188] sm:$0xf]
    %v138 = vld [vmem:[#allocation2 + $0x18c] sm:$0xf]
    %v139 = vld [vmem:[#allocation2 + $0x190] sm:$0xf]
    %v140 = vld [vmem:[#allocation2 + $0x194] sm:$0xf]
    %v141 = vld [vmem:[#allocation2 + $0x198] sm:$0xf]
    %v142 = vld [vmem:[#allocation2 + $0x19c] sm:$0xf]
    %v143 = vld [vmem:[#allocation2 + $0x1a0] sm:$0xf]
    %v144 = vld [vmem:[#allocation2 + $0x1a4] sm:$0xf]
    %v145 = vld [vmem:[#allocation2 + $0x1a8] sm:$0xf]
    %v146 = vld [vmem:[#allocation2 + $0x1ac] sm:$0xf]
    %v147 = vld [vmem:[#allocation2 + $0x1b0] sm:$0xf]
    %v148 = vld [vmem:[#allocation2 + $0x1b4] sm:$0xf]
    %v149 = vld [vmem:[#allocation2 + $0x1b8] sm:$0xf]
    %v150 = vld [vmem:[#allocation2 + $0x1bc] sm:$0xf]
    %v151 = vld [vmem:[#allocation2 + $0x1c0] sm:$0xf]
    %v152 = vld [vmem:[#allocation2 + $0x1c4] sm:$0xf]
    %v153 = vld [vmem:[#allocation2 + $0x1c8] sm:$0xf]
    %v154 = vld [vmem:[#allocation2 + $0x1cc] sm:$0xf]
    %v155 = vld [vmem:[#allocation2 + $0x1d0] sm:$0xf]
    %v156 = vld [vmem:[#allocation2 + $0x1d4] sm:$0xf]
    %v157 = vld [vmem:[#allocation2 + $0x1d8] sm:$0xf]
    %v158 = vld [vmem:[#allocation2 + $0x1dc] sm:$0xf]
    %v159 = vld [vmem:[#allocation2 + $0x1e0] sm:$0xf]
    %v160 = vld [vmem:[#allocation2 + $0x1e4] sm:$0xf]
    %v161 = vld [vmem:[#allocation2 + $0x1e8] sm:$0xf]
    %v162 = vld [vmem:[#allocation2 + $0x1ec] sm:$0xf]
    %v163 = vld [vmem:[#allocation2 + $0x1f0] sm:$0xf]
    %v164 = vld [vmem:[#allocation2 + $0x1f4] sm:$0xf]
    %v165 = vld [vmem:[#allocation2 + $0x1f8] sm:$0xf]
    %v166 = vld [vmem:[#allocation2 + $0x1fc] sm:$0xf]
    %v167 = vld [vmem:[%s4] sm:$0x1]
    %v168 = vlaneseq
    %v169 = vshrl.u32 %v168, 7
    %v170 = vsub.s32 0, %v169
    %v171 = vrot.slane %v167, %v170
    %v176 = vunpack.c.l.b16 %v35
    %v177 = vunpack.c.h.b16 %v35
    %v178 = vunpack.c.l.b16 %v36
    %v179 = vunpack.c.h.b16 %v36
    %v180 = vunpack.c.l.b16 %v37
    %v181 = vunpack.c.h.b16 %v37
    %v182 = vunpack.c.l.b16 %v38
    %v183 = vunpack.c.h.b16 %v38
    %v184 = vpack.c.b16 %v176, %v176
    %v185 = vpack.c.b16 %v177, %v177
    %v186 = vpack.c.b16 %v178, %v178
    %v187 = vpack.c.b16 %v179, %v179
    %v188 = vpack.c.b16 %v180, %v180
    %v189 = vpack.c.b16 %v181, %v181
    %v190 = vpack.c.b16 %v182, %v182
    %v191 = vpack.c.b16 %v183, %v183
    %v328 = vunpack.c.l.b16 %v39
    %v329 = vunpack.c.l.b16 %v40
    %v330 = vunpack.c.l.b16 %v41
    %v331 = vunpack.c.l.b16 %v42
    %v332 = vunpack.c.l.b16 %v43
    %v333 = vunpack.c.l.b16 %v44
    %v334 = vunpack.c.l.b16 %v45
    %v335 = vunpack.c.l.b16 %v46
    %v336 = vunpack.c.l.b16 %v47
    %v337 = vunpack.c.l.b16 %v48
    %v338 = vunpack.c.l.b16 %v49
    %v339 = vunpack.c.l.b16 %v50
    %v340 = vunpack.c.l.b16 %v51
    %v341 = vunpack.c.l.b16 %v52
    %v342 = vunpack.c.l.b16 %v53
    %v343 = vunpack.c.l.b16 %v54
    %v344 = vunpack.c.l.b16 %v55
    %v345 = vunpack.c.l.b16 %v56
    %v346 = vunpack.c.l.b16 %v57
    %v347 = vunpack.c.l.b16 %v58
    %v348 = vunpack.c.l.b16 %v59
    %v349 = vunpack.c.l.b16 %v60
    %v350 = vunpack.c.l.b16 %v61
    %v351 = vunpack.c.l.b16 %v62
    %v352 = vunpack.c.l.b16 %v63
    %v353 = vunpack.c.l.b16 %v64
    %v354 = vunpack.c.l.b16 %v65
    %v355 = vunpack.c.l.b16 %v66
    %v356 = vunpack.c.l.b16 %v67
    %v357 = vunpack.c.l.b16 %v68
    %v358 = vunpack.c.l.b16 %v69
    %v359 = vunpack.c.l.b16 %v70
    %v360 = vunpack.c.l.b16 %v71
    %v361 = vunpack.c.l.b16 %v72
    %v362 = vunpack.c.l.b16 %v73
    %v363 = vunpack.c.l.b16 %v74
    %v364 = vunpack.c.l.b16 %v75
    %v365 = vunpack.c.l.b16 %v76
    %v366 = vunpack.c.l.b16 %v77
    %v367 = vunpack.c.l.b16 %v78
    %v368 = vunpack.c.l.b16 %v79
    %v369 = vunpack.c.l.b16 %v80
    %v370 = vunpack.c.l.b16 %v81
    %v371 = vunpack.c.l.b16 %v82
    %v372 = vunpack.c.l.b16 %v83
    %v373 = vunpack.c.l.b16 %v84
    %v374 = vunpack.c.l.b16 %v85
    %v375 = vunpack.c.l.b16 %v86
    %v376 = vunpack.c.l.b16 %v87
    %v377 = vunpack.c.l.b16 %v88
    %v378 = vunpack.c.l.b16 %v89
    %v379 = vunpack.c.l.b16 %v90
    %v380 = vunpack.c.l.b16 %v91
    %v381 = vunpack.c.l.b16 %v92
    %v382 = vunpack.c.l.b16 %v93
    %v383 = vunpack.c.l.b16 %v94
    %v384 = vunpack.c.l.b16 %v95
    %v385 = vunpack.c.l.b16 %v96
    %v386 = vunpack.c.l.b16 %v97
    %v387 = vunpack.c.l.b16 %v98
    %v388 = vunpack.c.l.b16 %v99
    %v389 = vunpack.c.l.b16 %v100
    %v390 = vunpack.c.l.b16 %v101
    %v391 = vunpack.c.l.b16 %v102
    %v392 = vunpack.c.l.b16 %v103
    %v393 = vunpack.c.l.b16 %v104
    %v394 = vunpack.c.l.b16 %v105
    %v395 = vunpack.c.l.b16 %v106
    %v396 = vunpack.c.l.b16 %v107
    %v397 = vunpack.c.l.b16 %v108
    %v398 = vunpack.c.l.b16 %v109
    %v399 = vunpack.c.l.b16 %v110
    %v400 = vunpack.c.l.b16 %v111
    %v401 = vunpack.c.l.b16 %v112
    %v402 = vunpack.c.l.b16 %v113
    %v403 = vunpack.c.l.b16 %v114
    %v404 = vunpack.c.l.b16 %v115
    %v405 = vunpack.c.l.b16 %v116
    %v406 = vunpack.c.l.b16 %v117
    %v407 = vunpack.c.l.b16 %v118
    %v408 = vunpack.c.l.b16 %v119
    %v409 = vunpack.c.l.b16 %v120
    %v410 = vunpack.c.l.b16 %v121
    %v411 = vunpack.c.l.b16 %v122
    %v412 = vunpack.c.l.b16 %v123
    %v413 = vunpack.c.l.b16 %v124
    %v414 = vunpack.c.l.b16 %v125
    %v415 = vunpack.c.l.b16 %v126
    %v416 = vunpack.c.l.b16 %v127
    %v417 = vunpack.c.l.b16 %v128
    %v418 = vunpack.c.l.b16 %v129
    %v419 = vunpack.c.l.b16 %v130
    %v420 = vunpack.c.l.b16 %v131
    %v421 = vunpack.c.l.b16 %v132
    %v422 = vunpack.c.l.b16 %v133
    %v423 = vunpack.c.l.b16 %v134
    %v424 = vunpack.c.l.b16 %v135
    %v425 = vunpack.c.l.b16 %v136
    %v426 = vunpack.c.l.b16 %v137
    %v427 = vunpack.c.l.b16 %v138
    %v428 = vunpack.c.l.b16 %v139
    %v429 = vunpack.c.l.b16 %v140
    %v430 = vunpack.c.l.b16 %v141
    %v431 = vunpack.c.l.b16 %v142
    %v432 = vunpack.c.l.b16 %v143
    %v433 = vunpack.c.l.b16 %v144
    %v434 = vunpack.c.l.b16 %v145
    %v435 = vunpack.c.l.b16 %v146
    %v436 = vunpack.c.l.b16 %v147
    %v437 = vunpack.c.l.b16 %v148
    %v438 = vunpack.c.l.b16 %v149
    %v439 = vunpack.c.l.b16 %v150
    %v440 = vunpack.c.l.b16 %v151
    %v441 = vunpack.c.l.b16 %v152
    %v442 = vunpack.c.l.b16 %v153
    %v443 = vunpack.c.l.b16 %v154
    %v444 = vunpack.c.l.b16 %v155
    %v445 = vunpack.c.l.b16 %v156
    %v446 = vunpack.c.l.b16 %v157
    %v447 = vunpack.c.l.b16 %v158
    %v448 = vunpack.c.l.b16 %v159
    %v449 = vunpack.c.l.b16 %v160
    %v450 = vunpack.c.l.b16 %v161
    %v451 = vunpack.c.l.b16 %v162
    %v452 = vunpack.c.l.b16 %v163
    %v453 = vunpack.c.l.b16 %v164
    %v454 = vunpack.c.l.b16 %v165
    %v455 = vunpack.c.l.b16 %v166
    %v456 = vpack.c.b16 %v329, %v328
    %v457 = vpack.c.b16 %v331, %v330
    %v458 = vpack.c.b16 %v333, %v332
    %v459 = vpack.c.b16 %v335, %v334
    %v460 = vpack.c.b16 %v337, %v336
    %v461 = vpack.c.b16 %v339, %v338
    %v462 = vpack.c.b16 %v341, %v340
    %v463 = vpack.c.b16 %v343, %v342
    %v464 = vpack.c.b16 %v345, %v344
    %v465 = vpack.c.b16 %v347, %v346
    %v466 = vpack.c.b16 %v349, %v348
    %v467 = vpack.c.b16 %v351, %v350
    %v468 = vpack.c.b16 %v353, %v352
    %v469 = vpack.c.b16 %v355, %v354
    %v470 = vpack.c.b16 %v357, %v356
    %v471 = vpack.c.b16 %v359, %v358
    %v472 = vpack.c.b16 %v361, %v360
    %v473 = vpack.c.b16 %v363, %v362
    %v474 = vpack.c.b16 %v365, %v364
    %v475 = vpack.c.b16 %v367, %v366
    %v476 = vpack.c.b16 %v369, %v368
    %v477 = vpack.c.b16 %v371, %v370
    %v478 = vpack.c.b16 %v373, %v372
    %v479 = vpack.c.b16 %v375, %v374
    %v480 = vpack.c.b16 %v377, %v376
    %v481 = vpack.c.b16 %v379, %v378
    %v482 = vpack.c.b16 %v381, %v380
    %v483 = vpack.c.b16 %v383, %v382
    %v484 = vpack.c.b16 %v385, %v384
    %v485 = vpack.c.b16 %v387, %v386
    %v486 = vpack.c.b16 %v389, %v388
    %v487 = vpack.c.b16 %v391, %v390
    %v488 = vpack.c.b16 %v393, %v392
    %v489 = vpack.c.b16 %v395, %v394
    %v490 = vpack.c.b16 %v397, %v396
    %v491 = vpack.c.b16 %v399, %v398
    %v492 = vpack.c.b16 %v401, %v400
    %v493 = vpack.c.b16 %v403, %v402
    %v494 = vpack.c.b16 %v405, %v404
    %v495 = vpack.c.b16 %v407, %v406
    %v496 = vpack.c.b16 %v409, %v408
    %v497 = vpack.c.b16 %v411, %v410
    %v498 = vpack.c.b16 %v413, %v412
    %v499 = vpack.c.b16 %v415, %v414
    %v500 = vpack.c.b16 %v417, %v416
    %v501 = vpack.c.b16 %v419, %v418
    %v502 = vpack.c.b16 %v421, %v420
    %v503 = vpack.c.b16 %v423, %v422
    %v504 = vpack.c.b16 %v425, %v424
    %v505 = vpack.c.b16 %v427, %v426
    %v506 = vpack.c.b16 %v429, %v428
    %v507 = vpack.c.b16 %v431, %v430
    %v508 = vpack.c.b16 %v433, %v432
    %v509 = vpack.c.b16 %v435, %v434
    %v510 = vpack.c.b16 %v437, %v436
    %v511 = vpack.c.b16 %v439, %v438
    %v512 = vpack.c.b16 %v441, %v440
    %v513 = vpack.c.b16 %v443, %v442
    %v514 = vpack.c.b16 %v445, %v444
    %v515 = vpack.c.b16 %v447, %v446
    %v516 = vpack.c.b16 %v449, %v448
    %v517 = vpack.c.b16 %v451, %v450
    %v518 = vpack.c.b16 %v453, %v452
    %v519 = vpack.c.b16 %v455, %v454
    %584 = vmatprep.subr.bf16.mxu0 0
    %585 = vmatpush1.bf16.msra.mxu0 %v463
    %586 = vmatprep.subr.bf16.mxu0 0
    %587 = vmatpush1.bf16.msra.mxu0 %v462
    %588 = vmatprep.subr.bf16.mxu0 0
    %589 = vmatpush1.bf16.msra.mxu0 %v461
    %590 = vmatprep.subr.bf16.mxu0 0
    %591 = vmatpush1.bf16.msra.mxu0 %v460
    %592 = vmatprep.subr.bf16.mxu0 0
    %593 = vmatpush1.bf16.msra.mxu0 %v459
    %594 = vmatprep.subr.bf16.mxu0 0
    %595 = vmatpush1.bf16.msra.mxu0 %v458
    %596 = vmatprep.subr.bf16.mxu0 0
    %597 = vmatpush1.bf16.msra.mxu0 %v457
    %598 = vmatprep.subr.bf16.mxu0 0
    %599 = vmatpush1.bf16.msra.mxu0 %v456
    %600 = vmatprep.subr.bf16.mxu0 0
    %601 = vmatpush2.bf16.msra.mxu0 %v471
    %602 = vmatprep.subr.bf16.mxu0 0
    %603 = vmatpush2.bf16.msra.mxu0 %v470
    %604 = vmatprep.subr.bf16.mxu0 0
    %605 = vmatpush2.bf16.msra.mxu0 %v469
    %606 = vmatprep.subr.bf16.mxu0 0
    %607 = vmatpush2.bf16.msra.mxu0 %v468
    %608 = vmatprep.subr.bf16.mxu0 0
    %609 = vmatpush2.bf16.msra.mxu0 %v467
    %610 = vmatprep.subr.bf16.mxu0 0
    %611 = vmatpush2.bf16.msra.mxu0 %v466
    %612 = vmatprep.subr.bf16.mxu0 0
    %613 = vmatpush2.bf16.msra.mxu0 %v465
    %614 = vmatprep.subr.bf16.mxu0 0
    %615 = vmatpush2.bf16.msra.mxu0 %v464
    %616 = vmatprep.mubr.bf16.mxu0 %v185
    %617 = vmatmul.mubr.bf16.gmra.mxu0 %v184
    %v618 = vpop.f32.mrf.mxu0
    %v619 = vadd.f32 %v171, %v618
    %v620 = vpop.f32.mrf.mxu0
    %v621 = vpop.f32.mrf.mxu0
    %v622 = vpop.f32.mrf.mxu0
    %623 = vdwg.mxu0
    %624 = vmatprep.subr.bf16.mxu0 0
    %625 = vmatpush1.bf16.msra.mxu0 %v479
    %626 = vmatprep.subr.bf16.mxu0 0
    %627 = vmatpush1.bf16.msra.mxu0 %v478
    %628 = vmatprep.subr.bf16.mxu0 0
    %629 = vmatpush1.bf16.msra.mxu0 %v477
    %630 = vmatprep.subr.bf16.mxu0 0
    %631 = vmatpush1.bf16.msra.mxu0 %v476
    %632 = vmatprep.subr.bf16.mxu0 0
    %633 = vmatpush1.bf16.msra.mxu0 %v475
    %634 = vmatprep.subr.bf16.mxu0 0
    %635 = vmatpush1.bf16.msra.mxu0 %v474
    %636 = vmatprep.subr.bf16.mxu0 0
    %637 = vmatpush1.bf16.msra.mxu0 %v473
    %638 = vmatprep.subr.bf16.mxu0 0
    %639 = vmatpush1.bf16.msra.mxu0 %v472
    %640 = vmatprep.subr.bf16.mxu0 0
    %641 = vmatpush2.bf16.msra.mxu0 %v487
    %642 = vmatprep.subr.bf16.mxu0 0
    %643 = vmatpush2.bf16.msra.mxu0 %v486
    %644 = vmatprep.subr.bf16.mxu0 0
    %645 = vmatpush2.bf16.msra.mxu0 %v485
    %646 = vmatprep.subr.bf16.mxu0 0
    %647 = vmatpush2.bf16.msra.mxu0 %v484
    %648 = vmatprep.subr.bf16.mxu0 0
    %649 = vmatpush2.bf16.msra.mxu0 %v483
    %650 = vmatprep.subr.bf16.mxu0 0
    %651 = vmatpush2.bf16.msra.mxu0 %v482
    %652 = vmatprep.subr.bf16.mxu0 0
    %653 = vmatpush2.bf16.msra.mxu0 %v481
    %654 = vmatprep.subr.bf16.mxu0 0
    %655 = vmatpush2.bf16.msra.mxu0 %v480
    %656 = vmatprep.mubr.bf16.mxu0 %v187
    %657 = vmatmul.mubr.bf16.gmra.mxu0 %v186
    %v658 = vpop.f32.mrf.mxu0
    %v659 = vadd.f32 %v619, %v658
    %v660 = vpop.f32.mrf.mxu0
    %v661 = vpop.f32.mrf.mxu0
    %v662 = vpop.f32.mrf.mxu0
    %663 = vdwg.mxu0
    %664 = vmatprep.subr.bf16.mxu0 0
    %665 = vmatpush1.bf16.msra.mxu0 %v495
    %666 = vmatprep.subr.bf16.mxu0 0
    %667 = vmatpush1.bf16.msra.mxu0 %v494
    %668 = vmatprep.subr.bf16.mxu0 0
    %669 = vmatpush1.bf16.msra.mxu0 %v493
    %670 = vmatprep.subr.bf16.mxu0 0
    %671 = vmatpush1.bf16.msra.mxu0 %v492
    %672 = vmatprep.subr.bf16.mxu0 0
    %673 = vmatpush1.bf16.msra.mxu0 %v491
    %674 = vmatprep.subr.bf16.mxu0 0
    %675 = vmatpush1.bf16.msra.mxu0 %v490
    %676 = vmatprep.subr.bf16.mxu0 0
    %677 = vmatpush1.bf16.msra.mxu0 %v489
    %678 = vmatprep.subr.bf16.mxu0 0
    %679 = vmatpush1.bf16.msra.mxu0 %v488
    %680 = vmatprep.subr.bf16.mxu0 0
    %681 = vmatpush2.bf16.msra.mxu0 %v503
    %682 = vmatprep.subr.bf16.mxu0 0
    %683 = vmatpush2.bf16.msra.mxu0 %v502
    %684 = vmatprep.subr.bf16.mxu0 0
    %685 = vmatpush2.bf16.msra.mxu0 %v501
    %686 = vmatprep.subr.bf16.mxu0 0
    %687 = vmatpush2.bf16.msra.mxu0 %v500
    %688 = vmatprep.subr.bf16.mxu0 0
    %689 = vmatpush2.bf16.msra.mxu0 %v499
    %690 = vmatprep.subr.bf16.mxu0 0
    %691 = vmatpush2.bf16.msra.mxu0 %v498
    %692 = vmatprep.subr.bf16.mxu0 0
    %693 = vmatpush2.bf16.msra.mxu0 %v497
    %694 = vmatprep.subr.bf16.mxu0 0
    %695 = vmatpush2.bf16.msra.mxu0 %v496
    %696 = vmatprep.mubr.bf16.mxu0 %v189
    %697 = vmatmul.mubr.bf16.gmra.mxu0 %v188
    %v698 = vpop.f32.mrf.mxu0
    %v699 = vadd.f32 %v659, %v698
    %v700 = vpop.f32.mrf.mxu0
    %v701 = vpop.f32.mrf.mxu0
    %v702 = vpop.f32.mrf.mxu0
    %703 = vdwg.mxu0
    %704 = vmatprep.subr.bf16.mxu0 0
    %705 = vmatpush1.bf16.msra.mxu0 %v511
    %706 = vmatprep.subr.bf16.mxu0 0
    %707 = vmatpush1.bf16.msra.mxu0 %v510
    %708 = vmatprep.subr.bf16.mxu0 0
    %709 = vmatpush1.bf16.msra.mxu0 %v509
    %710 = vmatprep.subr.bf16.mxu0 0
    %711 = vmatpush1.bf16.msra.mxu0 %v508
    %712 = vmatprep.subr.bf16.mxu0 0
    %713 = vmatpush1.bf16.msra.mxu0 %v507
    %714 = vmatprep.subr.bf16.mxu0 0
    %715 = vmatpush1.bf16.msra.mxu0 %v506
    %716 = vmatprep.subr.bf16.mxu0 0
    %717 = vmatpush1.bf16.msra.mxu0 %v505
    %718 = vmatprep.subr.bf16.mxu0 0
    %719 = vmatpush1.bf16.msra.mxu0 %v504
    %720 = vmatprep.subr.bf16.mxu0 0
    %721 = vmatpush2.bf16.msra.mxu0 %v519
    %722 = vmatprep.subr.bf16.mxu0 0
    %723 = vmatpush2.bf16.msra.mxu0 %v518
    %724 = vmatprep.subr.bf16.mxu0 0
    %725 = vmatpush2.bf16.msra.mxu0 %v517
    %726 = vmatprep.subr.bf16.mxu0 0
    %727 = vmatpush2.bf16.msra.mxu0 %v516
    %728 = vmatprep.subr.bf16.mxu0 0
    %729 = vmatpush2.bf16.msra.mxu0 %v515
    %730 = vmatprep.subr.bf16.mxu0 0
    %731 = vmatpush2.bf16.msra.mxu0 %v514
    %732 = vmatprep.subr.bf16.mxu0 0
    %733 = vmatpush2.bf16.msra.mxu0 %v513
    %734 = vmatprep.subr.bf16.mxu0 0
    %735 = vmatpush2.bf16.msra.mxu0 %v512
    %736 = vmatprep.mubr.bf16.mxu0 %v191
    %737 = vmatmul.mubr.bf16.gmra.mxu0 %v190
    %v738 = vpop.f32.mrf.mxu0
    %v739 = vadd.f32 %v699, %v738
    %v740 = vpop.f32.mrf.mxu0
    %v741 = vpop.f32.mrf.mxu0
    %v742 = vpop.f32.mrf.mxu0
    %743 = vdwg.mxu0
    %v744 = vmax.f32 %v739, 0.0
    %v745 = vld [vmem:[%s3] sm:$0xf]
    %v746 = vld [vmem:[%s3 + $0x4] sm:$0xf]
    %v747 = vld [vmem:[%s3 + $0x8] sm:$0xf]
    %v748 = vld [vmem:[%s3 + $0xc] sm:$0xf]
    %v749 = vld [vmem:[%s3 + $0x10] sm:$0xf]
    %v750 = vld [vmem:[%s3 + $0x14] sm:$0xf]
    %v751 = vld [vmem:[%s3 + $0x18] sm:$0xf]
    %v752 = vld [vmem:[%s3 + $0x1c] sm:$0xf]
    %v753 = vld [vmem:[%s3 + $0x20] sm:$0xf]
    %v754 = vld [vmem:[%s3 + $0x24] sm:$0xf]
    %v755 = vld [vmem:[%s3 + $0x28] sm:$0xf]
    %v756 = vld [vmem:[%s3 + $0x2c] sm:$0xf]
    %v757 = vld [vmem:[%s3 + $0x30] sm:$0xf]
    %v758 = vld [vmem:[%s3 + $0x34] sm:$0xf]
    %v759 = vld [vmem:[%s3 + $0x38] sm:$0xf]
    %v760 = vld [vmem:[%s3 + $0x3c] sm:$0xf]
    %v761 = vpack.c.bf16 %v744, %v744
    %v762 = vld [vmem:[%s4 + $0x1] sm:$0x1]
    %v763 = vlaneseq
    %v764 = vshrl.u32 %v763, 7
    %v765 = vsub.s32 0, %v764
    %v766 = vrot.slane %v762, %v765
    %v783 = vunpack.c.l.b16 %v745
    %v784 = vunpack.c.l.b16 %v746
    %v785 = vunpack.c.l.b16 %v747
    %v786 = vunpack.c.l.b16 %v748
    %v787 = vunpack.c.l.b16 %v749
    %v788 = vunpack.c.l.b16 %v750
    %v789 = vunpack.c.l.b16 %v751
    %v790 = vunpack.c.l.b16 %v752
    %v791 = vunpack.c.l.b16 %v753
    %v792 = vunpack.c.l.b16 %v754
    %v793 = vunpack.c.l.b16 %v755
    %v794 = vunpack.c.l.b16 %v756
    %v795 = vunpack.c.l.b16 %v757
    %v796 = vunpack.c.l.b16 %v758
    %v797 = vunpack.c.l.b16 %v759
    %v798 = vunpack.c.l.b16 %v760
    %v799 = vpack.c.b16 %v784, %v783
    %v800 = vpack.c.b16 %v786, %v785
    %v801 = vpack.c.b16 %v788, %v787
    %v802 = vpack.c.b16 %v790, %v789
    %v803 = vpack.c.b16 %v792, %v791
    %v804 = vpack.c.b16 %v794, %v793
    %v805 = vpack.c.b16 %v796, %v795
    %v806 = vpack.c.b16 %v798, %v797
    %815 = vmatprep.subr.bf16.mxu0 0
    %816 = vmatpush1.bf16.msra.mxu0 %v806
    %817 = vmatprep.subr.bf16.mxu0 0
    %818 = vmatpush1.bf16.msra.mxu0 %v805
    %819 = vmatprep.subr.bf16.mxu0 0
    %820 = vmatpush1.bf16.msra.mxu0 %v804
    %821 = vmatprep.subr.bf16.mxu0 0
    %822 = vmatpush1.bf16.msra.mxu0 %v803
    %823 = vmatprep.subr.bf16.mxu0 0
    %824 = vmatpush1.bf16.msra.mxu0 %v802
    %825 = vmatprep.subr.bf16.mxu0 0
    %826 = vmatpush1.bf16.msra.mxu0 %v801
    %827 = vmatprep.subr.bf16.mxu0 0
    %828 = vmatpush1.bf16.msra.mxu0 %v800
    %829 = vmatprep.subr.bf16.mxu0 0
    %830 = vmatpush1.bf16.msra.mxu0 %v799
    %831 = vmatprep.subr.bf16.mxu0 0
    %832 = vmatpush2.bf16.msra.mxu0 0
    %833 = vmatprep.subr.bf16.mxu0 0
    %834 = vmatpush2.bf16.msra.mxu0 0
    %835 = vmatprep.subr.bf16.mxu0 0
    %836 = vmatpush2.bf16.msra.mxu0 0
    %837 = vmatprep.subr.bf16.mxu0 0
    %838 = vmatpush2.bf16.msra.mxu0 0
    %839 = vmatprep.subr.bf16.mxu0 0
    %840 = vmatpush2.bf16.msra.mxu0 0
    %841 = vmatprep.subr.bf16.mxu0 0
    %842 = vmatpush2.bf16.msra.mxu0 0
    %843 = vmatprep.subr.bf16.mxu0 0
    %844 = vmatpush2.bf16.msra.mxu0 0
    %845 = vmatprep.subr.bf16.mxu0 0
    %846 = vmatpush2.bf16.msra.mxu0 0
    %847 = vmatprep.mubr.bf16.mxu0 0
    %848 = vmatmul.mubr.bf16.gmra.mxu0 %v761
    %v849 = vpop.f32.mrf.mxu0
    %v850 = vadd.f32 %v766, %v849
    %v851 = vpop.f32.mrf.mxu0
    %v852 = vpop.f32.mrf.mxu0
    %v853 = vpop.f32.mrf.mxu0
    %854 = vdwg.mxu0
    %v855 = vmax.f32 %v850, 0.0
    %s856 = scalar_lea.vmem %s3, 64
    %v857 = vld [vmem:[%s856] sm:$0xf]
    %v858 = vld [vmem:[%s856 + $0x4] sm:$0xf]
    %v859 = vld [vmem:[%s856 + $0x8] sm:$0xf]
    %v860 = vld [vmem:[%s856 + $0xc] sm:$0xf]
    %v861 = vld [vmem:[%s856 + $0x10] sm:$0xf]
    %v862 = vld [vmem:[%s856 + $0x14] sm:$0xf]
    %v863 = vld [vmem:[%s856 + $0x18] sm:$0xf]
    %v864 = vld [vmem:[%s856 + $0x1c] sm:$0xf]
    %v865 = vld [vmem:[%s856 + $0x20] sm:$0xf]
    %v866 = vld [vmem:[%s856 + $0x24] sm:$0xf]
    %v867 = vld [vmem:[%s856 + $0x28] sm:$0xf]
    %v868 = vld [vmem:[%s856 + $0x2c] sm:$0xf]
    %v869 = vld [vmem:[%s856 + $0x30] sm:$0xf]
    %v870 = vld [vmem:[%s856 + $0x34] sm:$0xf]
    %v871 = vld [vmem:[%s856 + $0x38] sm:$0xf]
    %v872 = vld [vmem:[%s856 + $0x3c] sm:$0xf]
    %v873 = vpack.c.bf16 %v855, %v855
    %v874 = vld [vmem:[%s1] sm:$0xff]
    %v875 = vld [vmem:[#allocation2 + $0x200] sm:$0xf]
    %v876 = vld [vmem:[#allocation2 + $0x204] sm:$0xf]
    %v877 = vld [vmem:[#allocation2 + $0x208] sm:$0xf]
    %v878 = vld [vmem:[#allocation2 + $0x20c] sm:$0xf]
    %v879 = vld [vmem:[#allocation2 + $0x210] sm:$0xf]
    %v880 = vld [vmem:[#allocation2 + $0x214] sm:$0xf]
    %v881 = vld [vmem:[#allocation2 + $0x218] sm:$0xf]
    %v882 = vld [vmem:[#allocation2 + $0x21c] sm:$0xf]
    %v883 = vld [vmem:[#allocation2 + $0x220] sm:$0xf]
    %v884 = vld [vmem:[#allocation2 + $0x224] sm:$0xf]
    %v885 = vld [vmem:[#allocation2 + $0x228] sm:$0xf]
    %v886 = vld [vmem:[#allocation2 + $0x22c] sm:$0xf]
    %v887 = vld [vmem:[#allocation2 + $0x230] sm:$0xf]
    %v888 = vld [vmem:[#allocation2 + $0x234] sm:$0xf]
    %v889 = vld [vmem:[#allocation2 + $0x238] sm:$0xf]
    %v890 = vld [vmem:[#allocation2 + $0x23c] sm:$0xf]
    %v891 = vld [vmem:[#allocation2 + $0x240] sm:$0xf]
    %v892 = vld [vmem:[#allocation2 + $0x244] sm:$0xf]
    %v893 = vld [vmem:[#allocation2 + $0x248] sm:$0xf]
    %v894 = vld [vmem:[#allocation2 + $0x24c] sm:$0xf]
    %v895 = vld [vmem:[#allocation2 + $0x250] sm:$0xf]
    %v896 = vld [vmem:[#allocation2 + $0x254] sm:$0xf]
    %v897 = vld [vmem:[#allocation2 + $0x258] sm:$0xf]
    %v898 = vld [vmem:[#allocation2 + $0x25c] sm:$0xf]
    %v899 = vld [vmem:[#allocation2 + $0x260] sm:$0xf]
    %v900 = vld [vmem:[#allocation2 + $0x264] sm:$0xf]
    %v901 = vld [vmem:[#allocation2 + $0x268] sm:$0xf]
    %v902 = vld [vmem:[#allocation2 + $0x26c] sm:$0xf]
    %v903 = vld [vmem:[#allocation2 + $0x270] sm:$0xf]
    %v904 = vld [vmem:[#allocation2 + $0x274] sm:$0xf]
    %v905 = vld [vmem:[#allocation2 + $0x278] sm:$0xf]
    %v906 = vld [vmem:[#allocation2 + $0x27c] sm:$0xf]
    %v907 = vld [vmem:[%s4 + $0x2] sm:$0x1]
    %v908 = vlaneseq
    %v909 = vshrl.u32 %v908, 7
    %v910 = vsub.s32 0, %v909
    %v911 = vrot.slane %v907, %v910
    %v913 = vunpack.c.l.b16 %v874
    %v914 = vunpack.c.h.b16 %v874
    %v915 = vpack.c.b16 %v913, %v913
    %v916 = vpack.c.b16 %v914, %v914
    %v951 = vunpack.c.l.b16 %v875
    %v952 = vunpack.c.l.b16 %v876
    %v953 = vunpack.c.l.b16 %v877
    %v954 = vunpack.c.l.b16 %v878
    %v955 = vunpack.c.l.b16 %v879
    %v956 = vunpack.c.l.b16 %v880
    %v957 = vunpack.c.l.b16 %v881
    %v958 = vunpack.c.l.b16 %v882
    %v959 = vunpack.c.l.b16 %v883
    %v960 = vunpack.c.l.b16 %v884
    %v961 = vunpack.c.l.b16 %v885
    %v962 = vunpack.c.l.b16 %v886
    %v963 = vunpack.c.l.b16 %v887
    %v964 = vunpack.c.l.b16 %v888
    %v965 = vunpack.c.l.b16 %v889
    %v966 = vunpack.c.l.b16 %v890
    %v967 = vunpack.c.l.b16 %v891
    %v968 = vunpack.c.l.b16 %v892
    %v969 = vunpack.c.l.b16 %v893
    %v970 = vunpack.c.l.b16 %v894
    %v971 = vunpack.c.l.b16 %v895
    %v972 = vunpack.c.l.b16 %v896
    %v973 = vunpack.c.l.b16 %v897
    %v974 = vunpack.c.l.b16 %v898
    %v975 = vunpack.c.l.b16 %v899
    %v976 = vunpack.c.l.b16 %v900
    %v977 = vunpack.c.l.b16 %v901
    %v978 = vunpack.c.l.b16 %v902
    %v979 = vunpack.c.l.b16 %v903
    %v980 = vunpack.c.l.b16 %v904
    %v981 = vunpack.c.l.b16 %v905
    %v982 = vunpack.c.l.b16 %v906
    %v983 = vpack.c.b16 %v952, %v951
    %v984 = vpack.c.b16 %v954, %v953
    %v985 = vpack.c.b16 %v956, %v955
    %v986 = vpack.c.b16 %v958, %v957
    %v987 = vpack.c.b16 %v960, %v959
    %v988 = vpack.c.b16 %v962, %v961
    %v989 = vpack.c.b16 %v964, %v963
    %v990 = vpack.c.b16 %v966, %v965
    %v991 = vpack.c.b16 %v968, %v967
    %v992 = vpack.c.b16 %v970, %v969
    %v993 = vpack.c.b16 %v972, %v971
    %v994 = vpack.c.b16 %v974, %v973
    %v995 = vpack.c.b16 %v976, %v975
    %v996 = vpack.c.b16 %v978, %v977
    %v997 = vpack.c.b16 %v980, %v979
    %v998 = vpack.c.b16 %v982, %v981
    %1015 = vmatprep.subr.bf16.mxu0 0
    %1016 = vmatpush1.bf16.msra.mxu0 %v990
    %1017 = vmatprep.subr.bf16.mxu0 0
    %1018 = vmatpush1.bf16.msra.mxu0 %v989
    %1019 = vmatprep.subr.bf16.mxu0 0
    %1020 = vmatpush1.bf16.msra.mxu0 %v988
    %1021 = vmatprep.subr.bf16.mxu0 0
    %1022 = vmatpush1.bf16.msra.mxu0 %v987
    %1023 = vmatprep.subr.bf16.mxu0 0
    %1024 = vmatpush1.bf16.msra.mxu0 %v986
    %1025 = vmatprep.subr.bf16.mxu0 0
    %1026 = vmatpush1.bf16.msra.mxu0 %v985
    %1027 = vmatprep.subr.bf16.mxu0 0
    %1028 = vmatpush1.bf16.msra.mxu0 %v984
    %1029 = vmatprep.subr.bf16.mxu0 0
    %1030 = vmatpush1.bf16.msra.mxu0 %v983
    %1031 = vmatprep.subr.bf16.mxu0 0
    %1032 = vmatpush2.bf16.msra.mxu0 %v998
    %1033 = vmatprep.subr.bf16.mxu0 0
    %1034 = vmatpush2.bf16.msra.mxu0 %v997
    %1035 = vmatprep.subr.bf16.mxu0 0
    %1036 = vmatpush2.bf16.msra.mxu0 %v996
    %1037 = vmatprep.subr.bf16.mxu0 0
    %1038 = vmatpush2.bf16.msra.mxu0 %v995
    %1039 = vmatprep.subr.bf16.mxu0 0
    %1040 = vmatpush2.bf16.msra.mxu0 %v994
    %1041 = vmatprep.subr.bf16.mxu0 0
    %1042 = vmatpush2.bf16.msra.mxu0 %v993
    %1043 = vmatprep.subr.bf16.mxu0 0
    %1044 = vmatpush2.bf16.msra.mxu0 %v992
    %1045 = vmatprep.subr.bf16.mxu0 0
    %1046 = vmatpush2.bf16.msra.mxu0 %v991
    %1047 = vmatprep.mubr.bf16.mxu0 %v916
    %1048 = vmatmul.mubr.bf16.gmra.mxu0 %v915
    %v1049 = vpop.f32.mrf.mxu0
    %v1050 = vadd.f32 %v911, %v1049
    %v1051 = vpop.f32.mrf.mxu0
    %v1052 = vpop.f32.mrf.mxu0
    %v1053 = vpop.f32.mrf.mxu0
    %1054 = vdwg.mxu0
    %v1055 = vmax.f32 %v1050, 0.0
    %s1056 = scalar_lea.vmem %s3, 128
    %v1057 = vld [vmem:[%s1056] sm:$0xf]
    %v1058 = vld [vmem:[%s1056 + $0x4] sm:$0xf]
    %v1059 = vld [vmem:[%s1056 + $0x8] sm:$0xf]
    %v1060 = vld [vmem:[%s1056 + $0xc] sm:$0xf]
    %v1061 = vld [vmem:[%s1056 + $0x10] sm:$0xf]
    %v1062 = vld [vmem:[%s1056 + $0x14] sm:$0xf]
    %v1063 = vld [vmem:[%s1056 + $0x18] sm:$0xf]
    %v1064 = vld [vmem:[%s1056 + $0x1c] sm:$0xf]
    %v1065 = vld [vmem:[%s1056 + $0x20] sm:$0xf]
    %v1066 = vld [vmem:[%s1056 + $0x24] sm:$0xf]
    %v1067 = vld [vmem:[%s1056 + $0x28] sm:$0xf]
    %v1068 = vld [vmem:[%s1056 + $0x2c] sm:$0xf]
    %v1069 = vld [vmem:[%s1056 + $0x30] sm:$0xf]
    %v1070 = vld [vmem:[%s1056 + $0x34] sm:$0xf]
    %v1071 = vld [vmem:[%s1056 + $0x38] sm:$0xf]
    %v1072 = vld [vmem:[%s1056 + $0x3c] sm:$0xf]
    %v1073 = vpack.c.bf16 %v1055, %v1055
    %v1074 = vld [vmem:[%s4 + $0x3] sm:$0x1]
    %v1075 = vlaneseq
    %v1076 = vshrl.u32 %v1075, 7
    %v1077 = vsub.s32 0, %v1076
    %v1078 = vrot.slane %v1074, %v1077
    %v1095 = vunpack.c.l.b16 %v1057
    %v1096 = vunpack.c.l.b16 %v1058
    %v1097 = vunpack.c.l.b16 %v1059
    %v1098 = vunpack.c.l.b16 %v1060
    %v1099 = vunpack.c.l.b16 %v1061
    %v1100 = vunpack.c.l.b16 %v1062
    %v1101 = vunpack.c.l.b16 %v1063
    %v1102 = vunpack.c.l.b16 %v1064
    %v1103 = vunpack.c.l.b16 %v1065
    %v1104 = vunpack.c.l.b16 %v1066
    %v1105 = vunpack.c.l.b16 %v1067
    %v1106 = vunpack.c.l.b16 %v1068
    %v1107 = vunpack.c.l.b16 %v1069
    %v1108 = vunpack.c.l.b16 %v1070
    %v1109 = vunpack.c.l.b16 %v1071
    %v1110 = vunpack.c.l.b16 %v1072
    %v1111 = vpack.c.b16 %v1096, %v1095
    %v1112 = vpack.c.b16 %v1098, %v1097
    %v1113 = vpack.c.b16 %v1100, %v1099
    %v1114 = vpack.c.b16 %v1102, %v1101
    %v1115 = vpack.c.b16 %v1104, %v1103
    %v1116 = vpack.c.b16 %v1106, %v1105
    %v1117 = vpack.c.b16 %v1108, %v1107
    %v1118 = vpack.c.b16 %v1110, %v1109
    %1127 = vmatprep.subr.bf16.mxu0 0
    %1128 = vmatpush1.bf16.msra.mxu0 %v1118
    %1129 = vmatprep.subr.bf16.mxu0 0
    %1130 = vmatpush1.bf16.msra.mxu0 %v1117
    %1131 = vmatprep.subr.bf16.mxu0 0
    %1132 = vmatpush1.bf16.msra.mxu0 %v1116
    %1133 = vmatprep.subr.bf16.mxu0 0
    %1134 = vmatpush1.bf16.msra.mxu0 %v1115
    %1135 = vmatprep.subr.bf16.mxu0 0
    %1136 = vmatpush1.bf16.msra.mxu0 %v1114
    %1137 = vmatprep.subr.bf16.mxu0 0
    %1138 = vmatpush1.bf16.msra.mxu0 %v1113
    %1139 = vmatprep.subr.bf16.mxu0 0
    %1140 = vmatpush1.bf16.msra.mxu0 %v1112
    %1141 = vmatprep.subr.bf16.mxu0 0
    %1142 = vmatpush1.bf16.msra.mxu0 %v1111
    %1143 = vmatprep.subr.bf16.mxu0 0
    %1144 = vmatpush2.bf16.msra.mxu0 0
    %1145 = vmatprep.subr.bf16.mxu0 0
    %1146 = vmatpush2.bf16.msra.mxu0 0
    %1147 = vmatprep.subr.bf16.mxu0 0
    %1148 = vmatpush2.bf16.msra.mxu0 0
    %1149 = vmatprep.subr.bf16.mxu0 0
    %1150 = vmatpush2.bf16.msra.mxu0 0
    %1151 = vmatprep.subr.bf16.mxu0 0
    %1152 = vmatpush2.bf16.msra.mxu0 0
    %1153 = vmatprep.subr.bf16.mxu0 0
    %1154 = vmatpush2.bf16.msra.mxu0 0
    %1155 = vmatprep.subr.bf16.mxu0 0
    %1156 = vmatpush2.bf16.msra.mxu0 0
    %1157 = vmatprep.subr.bf16.mxu0 0
    %1158 = vmatpush2.bf16.msra.mxu0 0
    %1159 = vmatprep.mubr.bf16.mxu0 0
    %1160 = vmatmul.mubr.bf16.gmra.mxu0 %v1073
    %v1161 = vpop.f32.mrf.mxu0
    %v1162 = vadd.f32 %v1078, %v1161
    %v1163 = vpop.f32.mrf.mxu0
    %v1164 = vpop.f32.mrf.mxu0
    %v1165 = vpop.f32.mrf.mxu0
    %1166 = vdwg.mxu0
    %v1167 = vmax.f32 %v1162, 0.0
    %s1168 = scalar_lea.vmem %s3, 192
    %v1169 = vld [vmem:[%s1168] sm:$0xf]
    %v1170 = vld [vmem:[%s1168 + $0x4] sm:$0xf]
    %v1171 = vld [vmem:[%s1168 + $0x8] sm:$0xf]
    %v1172 = vld [vmem:[%s1168 + $0xc] sm:$0xf]
    %v1173 = vld [vmem:[%s1168 + $0x10] sm:$0xf]
    %v1174 = vld [vmem:[%s1168 + $0x14] sm:$0xf]
    %v1175 = vld [vmem:[%s1168 + $0x18] sm:$0xf]
    %v1176 = vld [vmem:[%s1168 + $0x1c] sm:$0xf]
    %v1177 = vld [vmem:[%s1168 + $0x20] sm:$0xf]
    %v1178 = vld [vmem:[%s1168 + $0x24] sm:$0xf]
    %v1179 = vld [vmem:[%s1168 + $0x28] sm:$0xf]
    %v1180 = vld [vmem:[%s1168 + $0x2c] sm:$0xf]
    %v1181 = vld [vmem:[%s1168 + $0x30] sm:$0xf]
    %v1182 = vld [vmem:[%s1168 + $0x34] sm:$0xf]
    %v1183 = vld [vmem:[%s1168 + $0x38] sm:$0xf]
    %v1184 = vld [vmem:[%s1168 + $0x3c] sm:$0xf]
    %v1185 = vpack.c.bf16 %v1167, %v1167
    %v1202 = vunpack.c.l.b16 %v1169
    %v1203 = vunpack.c.l.b16 %v1170
    %v1204 = vunpack.c.l.b16 %v1171
    %v1205 = vunpack.c.l.b16 %v1172
    %v1206 = vunpack.c.l.b16 %v1173
    %v1207 = vunpack.c.l.b16 %v1174
    %v1208 = vunpack.c.l.b16 %v1175
    %v1209 = vunpack.c.l.b16 %v1176
    %v1210 = vunpack.c.l.b16 %v1177
    %v1211 = vunpack.c.l.b16 %v1178
    %v1212 = vunpack.c.l.b16 %v1179
    %v1213 = vunpack.c.l.b16 %v1180
    %v1214 = vunpack.c.l.b16 %v1181
    %v1215 = vunpack.c.l.b16 %v1182
    %v1216 = vunpack.c.l.b16 %v1183
    %v1217 = vunpack.c.l.b16 %v1184
    %v1218 = vpack.c.b16 %v1203, %v1202
    %v1219 = vpack.c.b16 %v1205, %v1204
    %v1220 = vpack.c.b16 %v1207, %v1206
    %v1221 = vpack.c.b16 %v1209, %v1208
    %v1222 = vpack.c.b16 %v1211, %v1210
    %v1223 = vpack.c.b16 %v1213, %v1212
    %v1224 = vpack.c.b16 %v1215, %v1214
    %v1225 = vpack.c.b16 %v1217, %v1216
    %1234 = vmatprep.subr.bf16.mxu0 0
    %1235 = vmatpush1.bf16.msra.mxu0 %v1225
    %1236 = vmatprep.subr.bf16.mxu0 0
    %1237 = vmatpush1.bf16.msra.mxu0 %v1224
    %1238 = vmatprep.subr.bf16.mxu0 0
    %1239 = vmatpush1.bf16.msra.mxu0 %v1223
    %1240 = vmatprep.subr.bf16.mxu0 0
    %1241 = vmatpush1.bf16.msra.mxu0 %v1222
    %1242 = vmatprep.subr.bf16.mxu0 0
    %1243 = vmatpush1.bf16.msra.mxu0 %v1221
    %1244 = vmatprep.subr.bf16.mxu0 0
    %1245 = vmatpush1.bf16.msra.mxu0 %v1220
    %1246 = vmatprep.subr.bf16.mxu0 0
    %1247 = vmatpush1.bf16.msra.mxu0 %v1219
    %1248 = vmatprep.subr.bf16.mxu0 0
    %1249 = vmatpush1.bf16.msra.mxu0 %v1218
    %1250 = vmatprep.subr.bf16.mxu0 0
    %1251 = vmatpush2.bf16.msra.mxu0 0
    %1252 = vmatprep.subr.bf16.mxu0 0
    %1253 = vmatpush2.bf16.msra.mxu0 0
    %1254 = vmatprep.subr.bf16.mxu0 0
    %1255 = vmatpush2.bf16.msra.mxu0 0
    %1256 = vmatprep.subr.bf16.mxu0 0
    %1257 = vmatpush2.bf16.msra.mxu0 0
    %1258 = vmatprep.subr.bf16.mxu0 0
    %1259 = vmatpush2.bf16.msra.mxu0 0
    %1260 = vmatprep.subr.bf16.mxu0 0
    %1261 = vmatpush2.bf16.msra.mxu0 0
    %1262 = vmatprep.subr.bf16.mxu0 0
    %1263 = vmatpush2.bf16.msra.mxu0 0
    %1264 = vmatprep.subr.bf16.mxu0 0
    %1265 = vmatpush2.bf16.msra.mxu0 0
    %1266 = vmatprep.mubr.bf16.mxu0 0
    %1267 = vmatmul.mubr.bf16.gmra.mxu0 %v1185
    %v1268 = vpop.f32.mrf.mxu0
    %v1269 = vadd.f32 0.0, %v1268
    %v1270 = vpop.f32.mrf.mxu0
    %v1271 = vpop.f32.mrf.mxu0
    %v1272 = vpop.f32.mrf.mxu0
    %1273 = vdwg.mxu0
    %v1290 = vunpack.c.l.b16 %v857
    %v1291 = vunpack.c.l.b16 %v858
    %v1292 = vunpack.c.l.b16 %v859
    %v1293 = vunpack.c.l.b16 %v860
    %v1294 = vunpack.c.l.b16 %v861
    %v1295 = vunpack.c.l.b16 %v862
    %v1296 = vunpack.c.l.b16 %v863
    %v1297 = vunpack.c.l.b16 %v864
    %v1298 = vunpack.c.l.b16 %v865
    %v1299 = vunpack.c.l.b16 %v866
    %v1300 = vunpack.c.l.b16 %v867
    %v1301 = vunpack.c.l.b16 %v868
    %v1302 = vunpack.c.l.b16 %v869
    %v1303 = vunpack.c.l.b16 %v870
    %v1304 = vunpack.c.l.b16 %v871
    %v1305 = vunpack.c.l.b16 %v872
    %v1306 = vpack.c.b16 %v1291, %v1290
    %v1307 = vpack.c.b16 %v1293, %v1292
    %v1308 = vpack.c.b16 %v1295, %v1294
    %v1309 = vpack.c.b16 %v1297, %v1296
    %v1310 = vpack.c.b16 %v1299, %v1298
    %v1311 = vpack.c.b16 %v1301, %v1300
    %v1312 = vpack.c.b16 %v1303, %v1302
    %v1313 = vpack.c.b16 %v1305, %v1304
    %1322 = vmatprep.subr.bf16.mxu0 0
    %1323 = vmatpush1.bf16.msra.mxu0 %v1313
    %1324 = vmatprep.subr.bf16.mxu0 0
    %1325 = vmatpush1.bf16.msra.mxu0 %v1312
    %1326 = vmatprep.subr.bf16.mxu0 0
    %1327 = vmatpush1.bf16.msra.mxu0 %v1311
    %1328 = vmatprep.subr.bf16.mxu0 0
    %1329 = vmatpush1.bf16.msra.mxu0 %v1310
    %1330 = vmatprep.subr.bf16.mxu0 0
    %1331 = vmatpush1.bf16.msra.mxu0 %v1309
    %1332 = vmatprep.subr.bf16.mxu0 0
    %1333 = vmatpush1.bf16.msra.mxu0 %v1308
    %1334 = vmatprep.subr.bf16.mxu0 0
    %1335 = vmatpush1.bf16.msra.mxu0 %v1307
    %1336 = vmatprep.subr.bf16.mxu0 0
    %1337 = vmatpush1.bf16.msra.mxu0 %v1306
    %1338 = vmatprep.subr.bf16.mxu0 0
    %1339 = vmatpush2.bf16.msra.mxu0 0
    %1340 = vmatprep.subr.bf16.mxu0 0
    %1341 = vmatpush2.bf16.msra.mxu0 0
    %1342 = vmatprep.subr.bf16.mxu0 0
    %1343 = vmatpush2.bf16.msra.mxu0 0
    %1344 = vmatprep.subr.bf16.mxu0 0
    %1345 = vmatpush2.bf16.msra.mxu0 0
    %1346 = vmatprep.subr.bf16.mxu0 0
    %1347 = vmatpush2.bf16.msra.mxu0 0
    %1348 = vmatprep.subr.bf16.mxu0 0
    %1349 = vmatpush2.bf16.msra.mxu0 0
    %1350 = vmatprep.subr.bf16.mxu0 0
    %1351 = vmatpush2.bf16.msra.mxu0 0
    %1352 = vmatprep.subr.bf16.mxu0 0
    %1353 = vmatpush2.bf16.msra.mxu0 0
    %1354 = vmatprep.mubr.bf16.mxu0 0
    %1355 = vmatmul.mubr.bf16.gmra.mxu0 %v873
    %v1356 = vpop.f32.mrf.mxu0
    %v1357 = vadd.f32 %v1269, %v1356
    %v1358 = vpop.f32.mrf.mxu0
    %v1359 = vpop.f32.mrf.mxu0
    %v1360 = vpop.f32.mrf.mxu0
    %1361 = vdwg.mxu0
    %v1362 = vld [vmem:[%s4 + $0x4] sm:$0x1]
    %v1363 = vlaneseq
    %v1364 = vshrl.u32 %v1363, 7
    %v1365 = vsub.s32 0, %v1364
    %v1366 = vrot.slane %v1362, %v1365
    %v1367 = vadd.f32 %v1357, %v1366
    %v1368 = vxor.u32 %v1367, 2147483648
    %v1369 = vmul.f32 %v1368, 1.442695
    %v1370 = vpow.pop %v1369
    %v1371 = vadd.f32 %v1370, 1.0
    %v1372 = vrcp.pop %v1371
    %v1373 = vmul.f32 1.0, %v1372
    %1374 = vst [vmem:[%s5] sm:$0xff] %v1373
    // Predicated region
    $region26: #{_lambda_.1} parent=1 // pred_check
      _
    $region27: #{_lambda_.1} parent=1 // pred_check_branch
      %1376 = sbr.rel (0) target = $region29
    $region28: #{_lambda_.1} parent=1 // pred_region
      _
    $region29: #{_lambda_.1} parent=1 // pred_fallthru
      _
    // Predicated region
    $region30: #{_lambda_.1} parent=1 // pred_check
      _
    $region31: #{_lambda_.1} parent=1 // pred_check_branch
      %1378 = sbr.rel (0) target = $region33
    $region32: #{_lambda_.1} parent=1 // pred_region
      _
    $region33: #{_lambda_.1} parent=1 // pred_fallthru
      _
    %1379 = vsyncpa [#allocation3], 1

</llo_original>
